<compile_context>
chip_gen: v6e
topology: v6e:2x2x1
jax: 0.10.0
libtpu: 0.0.40
codegen_flags: <defaults>
</compile_context>

<pallas_src>
import functools

import jax
import jax.numpy as jnp
from jax.experimental import pallas as pl
from jax.experimental.pallas import tpu as pltpu


def _ntxent_kernel(pad_corr, wi_row_ref, wj_row_ref, wcol_ref, out_ref,
                   denom_i_ref, denom_j_ref):
    # Grid: (row tiles [parallel], column tiles [arbitrary / reduction, last]).
    # wi_row/wj_row: (tr, D) f32 row tiles of z_i/sqrt(t), z_j/sqrt(t)
    # wcol:          (tc, D) bf16 column tile of concat([z_i, z_j])/sqrt(t)
    # out:           (tr, 128) f32 per-row combined loss (lane-broadcast)
    # denom_i/denom_j: (tr, 1) f32 VMEM accumulators (persist across col tiles)
    c = pl.program_id(1)
    nc = pl.num_programs(1)

    @pl.when(c == 0)
    def _init():
        denom_i_ref[...] = jnp.zeros_like(denom_i_ref)
        denom_j_ref[...] = jnp.zeros_like(denom_j_ref)

    wi_r = wi_row_ref[...]                       # (tr, D) f32
    wj_r = wj_row_ref[...]                       # (tr, D) f32
    wcol = wcol_ref[...]                         # (tc, D) bf16

    # bf16 MXU feed with f32 accumulation; NT contraction on the feature
    # (lane) dim of both operands.  Each dot already equals cos_sim / t.
    nt = (((1,), (1,)), ((), ()))
    s_i = jax.lax.dot_general(wi_r.astype(jnp.bfloat16), wcol, nt,
                              preferred_element_type=jnp.float32)   # (tr, tc)
    denom_i_ref[...] += jnp.sum(jnp.exp(s_i), axis=1, keepdims=True)
    s_j = jax.lax.dot_general(wj_r.astype(jnp.bfloat16), wcol, nt,
                              preferred_element_type=jnp.float32)   # (tr, tc)
    denom_j_ref[...] += jnp.sum(jnp.exp(s_j), axis=1, keepdims=True)

    @pl.when(c == nc - 1)
    def _finalize():
        # positives / diagonal analytically in f32 (VPU), no masks needed.
        pos = jnp.sum(wi_r * wj_r, axis=1, keepdims=True)     # z_i.z_j / t
        diag_i = jnp.sum(wi_r * wi_r, axis=1, keepdims=True)  # ||z_i||^2 / t
        diag_j = jnp.sum(wj_r * wj_r, axis=1, keepdims=True)
        # Remove the self-similarity term and the exp(0)=1 contribution of the
        # padded zero columns from the accumulated full-row sums.
        di = denom_i_ref[...] - jnp.exp(diag_i) - pad_corr
        dj = denom_j_ref[...] - jnp.exp(diag_j) - pad_corr
        # row r of half i and row r of half j share the same positive:
        #   (-pos + log(denom_i)) + (-pos + log(denom_j))
        lp = -2.0 * pos + jnp.log(di) + jnp.log(dj)           # (tr, 1)
        out_ref[...] = jnp.broadcast_to(lp, out_ref.shape)    # lane-dense store


def contrastive_loss(emb_i, emb_j, temperature=0.5, row_tile=256):
    assert emb_i.shape == emb_j.shape and emb_i.ndim == 2
    B, D = emb_i.shape

    inv_sqrt_t = jax.lax.rsqrt(jnp.asarray(temperature, jnp.float32))
    eps2 = jnp.float32(1e-24)  # (F.normalize eps = 1e-12)^2

    def norm_scaled(x):
        # x / max(||x||, eps) * (1/sqrt(t)) -> all dots equal cos_sim / t.
        x = x.astype(jnp.float32)
        ssq = jnp.sum(x * x, axis=1, keepdims=True)
        return x * (jax.lax.rsqrt(jnp.maximum(ssq, eps2)) * inv_sqrt_t)

    # Normalize exactly once, outside the grid (review item 1).
    wi = norm_scaled(emb_i)
    wj = norm_scaled(emb_j)

    # Row tiling (pad the batch up to a tile multiple; padded rows are zero).
    tr = B if B <= row_tile else row_tile
    num_row_tiles = -(-B // tr)
    Bp = num_row_tiles * tr
    num_pad = Bp - B
    if num_pad:
        wi = jnp.pad(wi, ((0, num_pad), (0, 0)))
        wj = jnp.pad(wj, ((0, num_pad), (0, 0)))

    # Column-side operand: both halves pre-concatenated and cast to bf16 once
    # (bf16-native MXU feed + half-width DMA for the dominant operand).
    w_all = jnp.concatenate([wi, wj], axis=0).astype(jnp.bfloat16)  # (2Bp, D)
    tc = min(2 * Bp, 2 * tr)          # always divides 2*Bp
    num_col_tiles = (2 * Bp) // tc

    kernel = functools.partial(_ntxent_kernel, float(2 * num_pad))

    out = pl.pallas_call(
        kernel,
        out_shape=jax.ShapeDtypeStruct((Bp, 128), jnp.float32),
        grid=(num_row_tiles, num_col_tiles),
        in_specs=[
            # row tiles: constant over the column axis -> no re-DMA per c step
            pl.BlockSpec((tr, D), lambda r, c: (r, 0)),   # z_i/sqrt(t) rows, f32
            pl.BlockSpec((tr, D), lambda r, c: (r, 0)),   # z_j/sqrt(t) rows, f32
            pl.BlockSpec((tc, D), lambda r, c: (c, 0)),   # column tile, bf16
        ],
        out_specs=pl.BlockSpec((tr, 128), lambda r, c: (r, 0)),
        scratch_shapes=[pltpu.VMEM((tr, 1), jnp.float32),   # denom_i accumulator
                        pltpu.VMEM((tr, 1), jnp.float32)],  # denom_j accumulator
        compiler_params=pltpu.CompilerParams(
            dimension_semantics=("parallel", "arbitrary")),
    )(wi, wj, w_all)

    # tiny final reduce outside the kernel; padded rows are sliced away.
    return jnp.sum(out[:B, 0]) / jnp.float32(2 * B)


def _reference_loss(emb_i, emb_j, temperature=0.5):
    # pure-JAX replica of the PyTorch module (f32 throughout)
    def norm(x):
        return x / jnp.maximum(jnp.linalg.norm(x, axis=1, keepdims=True), 1e-12)
    z_i, z_j = norm(emb_i), norm(emb_j)
    b = emb_i.shape[0]
    reps = jnp.concatenate([z_i, z_j], axis=0)
    sim = reps @ reps.T
    sim_ij = jnp.diagonal(sim, offset=b)
    sim_ji = jnp.diagonal(sim, offset=-b)
    positives = jnp.concatenate([sim_ij, sim_ji], axis=0)
    neg_mask = 1.0 - jnp.eye(2 * b)
    nominator = jnp.exp(positives / temperature)
    denominator = jnp.sum(neg_mask * jnp.exp(sim / temperature), axis=1)
    loss_partial = -jnp.log(nominator / denominator)
    return jnp.sum(loss_partial) / (2 * b)


if __name__ == "__main__":
    key = jax.random.PRNGKey(0)
    k1, k2, k3, k4, k5, k6 = jax.random.split(key, 6)

    # bf16 MXU feed -> cos/t carries ~1e-3-level error; tolerances reflect that.
    RTOL, ATOL = 2e-3, 2e-3

    # case 1: small batch -> grid (1,1), full-array blocks, no padding
    B, D = 8, 32
    emb_i = jax.random.normal(k1, (B, D), dtype=jnp.float32)
    emb_j = jax.random.normal(k2, (B, D), dtype=jnp.float32)
    loss = contrastive_loss(emb_i, emb_j, temperature=0.5)
    jax.block_until_ready(loss)
    ref = _reference_loss(emb_i, emb_j, temperature=0.5)
    assert jnp.allclose(loss, ref, rtol=RTOL, atol=ATOL), (loss, ref)

    # case 2: non-multiple batch with a small row tile -> exercises batch
    # padding, 4x4 grid, and the column-wise denominator accumulation.
    B2, D2 = 200, 64
    emb_i2 = jax.random.normal(k3, (B2, D2), dtype=jnp.float32)
    emb_j2 = jax.random.normal(k4, (B2, D2), dtype=jnp.float32)
    loss2 = contrastive_loss(emb_i2, emb_j2, temperature=0.5, row_tile=64)
    jax.block_until_ready(loss2)
    ref2 = _reference_loss(emb_i2, emb_j2, temperature=0.5)
    assert jnp.allclose(loss2, ref2, rtol=RTOL, atol=ATOL), (loss2, ref2)

    # case 3: exact tiling, multi row-tile / multi col-tile, no padding
    B3, D3 = 256, 128
    emb_i3 = jax.random.normal(k5, (B3, D3), dtype=jnp.float32)
    emb_j3 = jax.random.normal(k6, (B3, D3), dtype=jnp.float32)
    loss3 = contrastive_loss(emb_i3, emb_j3, temperature=0.5, row_tile=128)
    jax.block_until_ready(loss3)
    ref3 = _reference_loss(emb_i3, emb_j3, temperature=0.5)
    assert jnp.allclose(loss3, ref3, rtol=RTOL, atol=ATOL), (loss3, ref3)

    print("KERNEL_OK")
</pallas_src>

<mosaic_0001>
module attributes {stable_mosaic.version = 11 : i64} {
  func.func @_ntxent_kernel(%arg0: i32, %arg1: i32, %arg2: memref<8x32xf32, #tpu.memory_space<vmem>>, %arg3: memref<8x32xf32, #tpu.memory_space<vmem>>, %arg4: memref<16x32xbf16, #tpu.memory_space<vmem>>, %arg5: memref<8x128xf32, #tpu.memory_space<vmem>>, %arg6: memref<8x1xf32, #tpu.memory_space<vmem>>, %arg7: memref<8x1xf32, #tpu.memory_space<vmem>>) attributes {dimension_semantics = [#tpu.dimension_semantics<parallel>, #tpu.dimension_semantics<arbitrary>], iteration_bounds = array<i64: 1, 1>, scalar_prefetch = 0 : i64, scratch_operands = 2 : i64, tpu.core_type = #tpu.core_type<tc>, window_params = [{transform_indices = @transform_0, window_bounds = array<i64: 8, 32>}, {transform_indices = @transform_1, window_bounds = array<i64: 8, 32>}, {transform_indices = @transform_2, window_bounds = array<i64: 16, 32>}, {transform_indices = @transform_3, window_bounds = array<i64: 8, 128>}]} {
    %c0_i32 = arith.constant 0 : i32
    %0 = arith.cmpi eq, %arg1, %c0_i32 : i32
    %1 = arith.extui %0 : i1 to i32
    %c0_i32_0 = arith.constant 0 : i32
    %2 = arith.cmpi ne, %1, %c0_i32_0 : i32
    scf.if %2 {
      %cst_19 = arith.constant 0.000000e+00 : f32
      %25 = vector.broadcast %cst_19 : f32 to vector<8x1xf32>
      %c0_20 = arith.constant 0 : index
      %c0_21 = arith.constant 0 : index
      %26 = vector.load %arg6[%c0_20, %c0_21] : memref<8x1xf32, #tpu.memory_space<vmem>>, vector<8x1xf32>
      tpu.vector_store %arg6[%c0_20, %c0_21], %25 {strides = array<i32>} : memref<8x1xf32, #tpu.memory_space<vmem>>, vector<8x1xf32>,
      %cst_22 = arith.constant 0.000000e+00 : f32
      %27 = vector.broadcast %cst_22 : f32 to vector<8x1xf32>
      %c0_23 = arith.constant 0 : index
      %c0_24 = arith.constant 0 : index
      %28 = vector.load %arg7[%c0_23, %c0_24] : memref<8x1xf32, #tpu.memory_space<vmem>>, vector<8x1xf32>
      tpu.vector_store %arg7[%c0_23, %c0_24], %27 {strides = array<i32>} : memref<8x1xf32, #tpu.memory_space<vmem>>, vector<8x1xf32>,
    } else {
    }
    %c0 = arith.constant 0 : index
    %c0_1 = arith.constant 0 : index
    %3 = vector.load %arg2[%c0, %c0_1] : memref<8x32xf32, #tpu.memory_space<vmem>>, vector<8x32xf32>
    %c0_2 = arith.constant 0 : index
    %c0_3 = arith.constant 0 : index
    %4 = vector.load %arg3[%c0_2, %c0_3] : memref<8x32xf32, #tpu.memory_space<vmem>>, vector<8x32xf32>
    %c0_4 = arith.constant 0 : index
    %c0_5 = arith.constant 0 : index
    %5 = vector.load %arg4[%c0_4, %c0_5] : memref<16x32xbf16, #tpu.memory_space<vmem>>, vector<16x32xbf16>
    %6 = arith.truncf %3 : vector<8x32xf32> to vector<8x32xbf16>
    %cst = arith.constant dense<0.000000e+00> : vector<8x16xf32>
    %7 = tpu.matmul %6, %5, %cst {dimension_numbers = #tpu.dot_dimension_numbers<[1], [1], [0], [0], [0, 0, 1, 0], [], []>} : vector<8x32xbf16>, vector<16x32xbf16>, vector<8x16xf32> -> vector<8x16xf32>
    %c0_6 = arith.constant 0 : index
    %c0_7 = arith.constant 0 : index
    %8 = vector.load %arg6[%c0_6, %c0_7] : memref<8x1xf32, #tpu.memory_space<vmem>>, vector<8x1xf32>
    %9 = math.exp %7 : vector<8x16xf32>
    %cst_8 = arith.constant dense<0.000000e+00> : vector<8xf32>
    %10 = vector.multi_reduction <add>, %9, %cst_8 [1] : vector<8x16xf32> to vector<8xf32>
    %11 = vector.shape_cast %10 : vector<8xf32> to vector<8x1xf32>
    %12 = arith.addf %8, %11 : vector<8x1xf32>
    %c0_9 = arith.constant 0 : index
    %c0_10 = arith.constant 0 : index
    %13 = vector.load %arg6[%c0_9, %c0_10] : memref<8x1xf32, #tpu.memory_space<vmem>>, vector<8x1xf32>
    tpu.vector_store %arg6[%c0_9, %c0_10], %12 {strides = array<i32>} : memref<8x1xf32, #tpu.memory_space<vmem>>, vector<8x1xf32>,
    %14 = arith.truncf %4 : vector<8x32xf32> to vector<8x32xbf16>
    %cst_11 = arith.constant dense<0.000000e+00> : vector<8x16xf32>
    %15 = tpu.matmul %14, %5, %cst_11 {dimension_numbers = #tpu.dot_dimension_numbers<[1], [1], [0], [0], [0, 0, 1, 0], [], []>} : vector<8x32xbf16>, vector<16x32xbf16>, vector<8x16xf32> -> vector<8x16xf32>
    %c0_12 = arith.constant 0 : index
    %c0_13 = arith.constant 0 : index
    %16 = vector.load %arg7[%c0_12, %c0_13] : memref<8x1xf32, #tpu.memory_space<vmem>>, vector<8x1xf32>
    %17 = math.exp %15 : vector<8x16xf32>
    %cst_14 = arith.constant dense<0.000000e+00> : vector<8xf32>
    %18 = vector.multi_reduction <add>, %17, %cst_14 [1] : vector<8x16xf32> to vector<8xf32>
    %19 = vector.shape_cast %18 : vector<8xf32> to vector<8x1xf32>
    %20 = arith.addf %16, %19 : vector<8x1xf32>
    %c0_15 = arith.constant 0 : index
    %c0_16 = arith.constant 0 : index
    %21 = vector.load %arg7[%c0_15, %c0_16] : memref<8x1xf32, #tpu.memory_space<vmem>>, vector<8x1xf32>
    tpu.vector_store %arg7[%c0_15, %c0_16], %20 {strides = array<i32>} : memref<8x1xf32, #tpu.memory_space<vmem>>, vector<8x1xf32>,
    %c0_i32_17 = arith.constant 0 : i32
    %22 = arith.cmpi eq, %arg1, %c0_i32_17 : i32
    %23 = arith.extui %22 : i1 to i32
    %c0_i32_18 = arith.constant 0 : i32
    %24 = arith.cmpi ne, %23, %c0_i32_18 : i32
    scf.if %24 {
      %25 = arith.mulf %3, %4 : vector<8x32xf32>
      %cst_19 = arith.constant dense<0.000000e+00> : vector<8xf32>
      %26 = vector.multi_reduction <add>, %25, %cst_19 [1] : vector<8x32xf32> to vector<8xf32>
      %27 = vector.shape_cast %26 : vector<8xf32> to vector<8x1xf32>
      %28 = arith.mulf %3, %3 : vector<8x32xf32>
      %cst_20 = arith.constant dense<0.000000e+00> : vector<8xf32>
      %29 = vector.multi_reduction <add>, %28, %cst_20 [1] : vector<8x32xf32> to vector<8xf32>
      %30 = vector.shape_cast %29 : vector<8xf32> to vector<8x1xf32>
      %31 = arith.mulf %4, %4 : vector<8x32xf32>
      %cst_21 = arith.constant dense<0.000000e+00> : vector<8xf32>
      %32 = vector.multi_reduction <add>, %31, %cst_21 [1] : vector<8x32xf32> to vector<8xf32>
      %33 = vector.shape_cast %32 : vector<8xf32> to vector<8x1xf32>
      %c0_22 = arith.constant 0 : index
      %c0_23 = arith.constant 0 : index
      %34 = vector.load %arg6[%c0_22, %c0_23] : memref<8x1xf32, #tpu.memory_space<vmem>>, vector<8x1xf32>
      %35 = math.exp %30 : vector<8x1xf32>
      %36 = arith.subf %34, %35 : vector<8x1xf32>
      %cst_24 = arith.constant 0.000000e+00 : f32
      %37 = vector.broadcast %cst_24 : f32 to vector<8x1xf32>
      %38 = arith.subf %36, %37 : vector<8x1xf32>
      %c0_25 = arith.constant 0 : index
      %c0_26 = arith.constant 0 : index
      %39 = vector.load %arg7[%c0_25, %c0_26] : memref<8x1xf32, #tpu.memory_space<vmem>>, vector<8x1xf32>
      %40 = math.exp %33 : vector<8x1xf32>
      %41 = arith.subf %39, %40 : vector<8x1xf32>
      %cst_27 = arith.constant 0.000000e+00 : f32
      %42 = vector.broadcast %cst_27 : f32 to vector<8x1xf32>
      %43 = arith.subf %41, %42 : vector<8x1xf32>
      %cst_28 = arith.constant -2.000000e+00 : f32
      %44 = vector.broadcast %cst_28 : f32 to vector<8x1xf32>
      %45 = arith.mulf %44, %27 : vector<8x1xf32>
      %46 = math.log %38 : vector<8x1xf32>
      %47 = arith.addf %45, %46 : vector<8x1xf32>
      %48 = math.log %43 : vector<8x1xf32>
      %49 = arith.addf %47, %48 : vector<8x1xf32>
      %50 = vector.shape_cast %49 : vector<8x1xf32> to vector<8x1xf32>
      %51 = vector.broadcast %50 : vector<8x1xf32> to vector<8x128xf32>
      %c0_29 = arith.constant 0 : index
      %c0_30 = arith.constant 0 : index
      %52 = vector.load %arg5[%c0_29, %c0_30] : memref<8x128xf32, #tpu.memory_space<vmem>>, vector<8x128xf32>
      tpu.vector_store %arg5[%c0_29, %c0_30], %51 {strides = array<i32>} : memref<8x128xf32, #tpu.memory_space<vmem>>, vector<8x128xf32>,
    } else {
    }
    return
  }
  func.func @transform_0(%arg0: i32, %arg1: i32) -> (i32, i32) {
    %c0_i32 = arith.constant 0 : i32
    %c0_i32_0 = arith.constant 0 : i32
    return %arg0, %c0_i32 : i32, i32
  }
  func.func @transform_1(%arg0: i32, %arg1: i32) -> (i32, i32) {
    %c0_i32 = arith.constant 0 : i32
    %c0_i32_0 = arith.constant 0 : i32
    return %arg0, %c0_i32 : i32, i32
  }
  func.func @transform_2(%arg0: i32, %arg1: i32) -> (i32, i32) {
    %c0_i32 = arith.constant 0 : i32
    %c0_i32_0 = arith.constant 0 : i32
    return %arg1, %c0_i32 : i32, i32
  }
  func.func @transform_3(%arg0: i32, %arg1: i32) -> (i32, i32) {
    %c0_i32 = arith.constant 0 : i32
    %c0_i32_0 = arith.constant 0 : i32
    return %arg0, %c0_i32 : i32, i32
  }
}

</mosaic_0001>

<llo_original>
// kernel: tpu_custom_call.1
$region0: #{tpu_custom_call.1}
  #allocation0 [shape = 'u32[]', space=smem, size = 0x4, offset = 0x4, fixed_abs, tag = 'smem constant byte address 0x4 - core index']
  #allocation1 [shape = 'u32[144,128]{1,0:T(1,128)}', space=vmem, size = 0x12000, scoped, tag = 'internal scratch']
  #allocation2 [shape = 'f32[8,1]{1,0:T(8,128)}', space=vmem, size = 0x1000, scoped, tag = 'scratch operand']
  #allocation3 [shape = 'f32[8,1]{1,0:T(8,128)}', space=vmem, size = 0x1000, scoped, tag = 'scratch operand']
  %s0 = inlined_call_operand.hbm [shape: f32[8,32], index: 0, kind: input, shape index: {}]
  %s1 = inlined_call_operand.hbm [shape: f32[8,32], index: 1, kind: input, shape index: {}]
  %s2 = inlined_call_operand.hbm [shape: bf16[16,32], index: 2, kind: input, shape index: {}]
  %s3 = inlined_call_operand.hbm [shape: f32[8,128], index: 3, kind: output, shape index: {}]
  %s4 = sld [smem:[#allocation0]]
  $region42: #{tpu_custom_call.1} parent=0
    _
  %s6 = ssub.s32 1, %s4
  %s7 = scalar_select 0, %s6, %s4
  $region1: #{tpu_custom_call.1} parent=0
    #allocation4 [shape = 'u8[4096]{0}', space=vmem, size = 0x1000, scoped, tag = 'input window, operand 0, single buffered']
    #allocation5 [shape = 's32[1]{0}', space=sflag, size = 0x4, scoped, tag = 'scoped memory for tpu_custom_call.1']
    #allocation6 [shape = 's32[1]{0}', space=sflag, size = 0x4, scoped, tag = 'scoped memory for tpu_custom_call.1']
    #allocation7 [shape = 'u8[4096]{0}', space=vmem, size = 0x1000, scoped, tag = 'input window, operand 1, single buffered']
    #allocation8 [shape = 's32[1]{0}', space=sflag, size = 0x4, scoped, tag = 'scoped memory for tpu_custom_call.1']
    #allocation9 [shape = 'u8[4096]{0}', space=vmem, size = 0x1000, scoped, tag = 'input window, operand 2, single buffered']
    #allocation10 [shape = 'u8[4096]{0}', space=vmem, size = 0x1000, scoped, tag = 'output window, operand 0, single buffered']
    %8 = vsyncpa [#allocation5], 0
    %9 = vsyncpa [#allocation8], 0
    %10 = vsyncpa [#allocation6], 0
    // Predicated region
    $region2: #{tpu_custom_call.1} parent=1 // pred_check
      _
    $region3: #{tpu_custom_call.1} parent=1 // pred_check_branch
      %12 = sbr.rel (0) target = $region5
    $region4: #{tpu_custom_call.1} parent=1 // pred_region
      %s14 = ssub.s32 128, 128
      %15 = vsyncadd [#allocation5], %s14
      %s17 = sshll.u32 [#allocation4], 4
      %s18 = int_to_ptr.vmem [resolvable:$true] %s17
      %20 = dma.hbm_to_vmem [thread:$0]  %s0, 128, %s18, [#allocation5]
    $region5: #{tpu_custom_call.1} parent=1 // pred_fallthru
      _
    // Predicated region
    $region6: #{tpu_custom_call.1} parent=1 // pred_check
      _
    $region7: #{tpu_custom_call.1} parent=1 // pred_check_branch
      %22 = sbr.rel (0) target = $region9
    $region8: #{tpu_custom_call.1} parent=1 // pred_region
      %s24 = ssub.s32 128, 128
      %25 = vsyncadd [#allocation8], %s24
      %s27 = sshll.u32 [#allocation7], 4
      %s28 = int_to_ptr.vmem [resolvable:$true] %s27
      %30 = dma.hbm_to_vmem [thread:$0]  %s1, 128, %s28, [#allocation8]
    $region9: #{tpu_custom_call.1} parent=1 // pred_fallthru
      _
    // Predicated region
    $region10: #{tpu_custom_call.1} parent=1 // pred_check
      _
    $region11: #{tpu_custom_call.1} parent=1 // pred_check_branch
      %32 = sbr.rel (0) target = $region13
    $region12: #{tpu_custom_call.1} parent=1 // pred_region
      %s34 = ssub.s32 128, 128
      %35 = vsyncadd [#allocation8], %s34
      %s36 = sshll.u32 [#allocation9], 4
      %s37 = int_to_ptr.vmem [resolvable:$true] %s36
      %42 = dma.hbm_to_vmem [thread:$0]  %s2, 128, %s37, [#allocation8], 64, 64, 4
    $region13: #{tpu_custom_call.1} parent=1 // pred_fallthru
      _
    // Predicated region
    $region14: #{tpu_custom_call.1} parent=1 // pred_check
      _
    $region15: #{tpu_custom_call.1} parent=1 // pred_check_branch
      %44 = sbr.rel (0) target = $region17
    $region16: #{tpu_custom_call.1} parent=1 // pred_region
      %45 = dma.done [#allocation5], 128
    $region17: #{tpu_custom_call.1} parent=1 // pred_fallthru
      _
    // Predicated region
    $region18: #{tpu_custom_call.1} parent=1 // pred_check
      _
    $region19: #{tpu_custom_call.1} parent=1 // pred_check_branch
      %47 = sbr.rel (0) target = $region21
    $region20: #{tpu_custom_call.1} parent=1 // pred_region
      %48 = dma.done [#allocation8], 128
    $region21: #{tpu_custom_call.1} parent=1 // pred_fallthru
      _
    // Predicated region
    $region22: #{tpu_custom_call.1} parent=1 // pred_check
      _
    $region23: #{tpu_custom_call.1} parent=1 // pred_check_branch
      %50 = sbr.rel (0) target = $region25
    $region24: #{tpu_custom_call.1} parent=1 // pred_region
      %51 = dma.done [#allocation8], 128
    $region25: #{tpu_custom_call.1} parent=1 // pred_fallthru
      _
    %p53 = scmp.eq.s32.totalorder 0, 0
    // Predicated region
    $region26: #{tpu_custom_call.1} parent=1 // pred_check
      %p54 = pneg %p53
    $region27: #{tpu_custom_call.1} parent=1 // pred_check_branch
      %56 = sbr.rel (%p54) target = $region29
    $region28: #{tpu_custom_call.1} parent=1 // pred_region
      %vm57 = vcmask 7168
      %58 = vst.msk [vmem:[#allocation2] sm:$0xff] %vm57, 0.0
      %59 = vst.msk [vmem:[#allocation3] sm:$0xff] %vm57, 0.0
    $region29: #{tpu_custom_call.1} parent=1 // pred_fallthru
      _
    %v60 = vld [vmem:[#allocation4] sm:$0xff]
    %v61 = vld [vmem:[#allocation7] sm:$0xff]
    %v62 = vld [vmem:[#allocation9] sm:$0xf]
    %v63 = vld [vmem:[#allocation9 + $0x4] sm:$0xf]
    %v64 = vpack.c.bf16 %v60, %v60
    %v67 = vunpack.c.l.b16 %v62
    %v68 = vunpack.c.l.b16 %v63
    %v69 = vpack.c.b16 %v68, %v67
    %vm70 = vcmask 261120
    %v72 = vsel %vm70, %v64, 0
    %v75 = vsel %vm70, %v69, 0
    %77 = vmatprep.subr.bf16.mxu0 0
    %78 = vmatpush1.bf16.xpose.msra.mxu0 0
    %79 = vmatprep.subr.bf16.mxu0 0
    %80 = vmatpush1.bf16.xpose.msra.mxu0 0
    %81 = vmatprep.subr.bf16.mxu0 0
    %82 = vmatpush1.bf16.xpose.msra.mxu0 0
    %83 = vmatprep.subr.bf16.mxu0 0
    %84 = vmatpush1.bf16.xpose.msra.mxu0 0
    %85 = vmatprep.subr.bf16.mxu0 0
    %86 = vmatpush1.bf16.xpose.msra.mxu0 0
    %87 = vmatprep.subr.bf16.mxu0 0
    %88 = vmatpush1.bf16.xpose.msra.mxu0 0
    %89 = vmatprep.subr.bf16.mxu0 0
    %90 = vmatpush1.bf16.xpose.msra.mxu0 0
    %91 = vmatprep.subr.bf16.mxu0 0
    %92 = vmatpush1.bf16.xpose.msra.mxu0 %v75
    %93 = vmatprep.subr.bf16.mxu0 0
    %94 = vmatpush2.bf16.xpose.msra.mxu0 0
    %95 = vmatprep.subr.bf16.mxu0 0
    %96 = vmatpush2.bf16.xpose.msra.mxu0 0
    %97 = vmatprep.subr.bf16.mxu0 0
    %98 = vmatpush2.bf16.xpose.msra.mxu0 0
    %99 = vmatprep.subr.bf16.mxu0 0
    %100 = vmatpush2.bf16.xpose.msra.mxu0 0
    %101 = vmatprep.subr.bf16.mxu0 0
    %102 = vmatpush2.bf16.xpose.msra.mxu0 0
    %103 = vmatprep.subr.bf16.mxu0 0
    %104 = vmatpush2.bf16.xpose.msra.mxu0 0
    %105 = vmatprep.subr.bf16.mxu0 0
    %106 = vmatpush2.bf16.xpose.msra.mxu0 0
    %107 = vmatprep.subr.bf16.mxu0 0
    %108 = vmatpush2.bf16.xpose.msra.mxu0 0
    %109 = vmatprep.mubr.bf16.mxu0 0
    %110 = vmatmul.mubr.bf16.gmra.mxu0 %v72
    %v111 = vpop.f32.mrf.mxu0
    %v112 = vadd.f32 0.0, %v111
    %v113 = vpop.f32.mrf.mxu0
    %v114 = vpop.f32.mrf.mxu0
    %v115 = vpop.f32.mrf.mxu0
    %116 = vdwg.mxu0
    %v117 = vld [vmem:[#allocation2] sm:$0xff]
    %v118 = vmul.f32 %v112, 1.442695
    %v119 = vpow.pop %v118
    %vm120 = vcmask 130048
    %v121 = vsel %vm120, %v119, 0.0
    %122 = vadd.xlane.f32.xlu0 %v121
    %v123 = vpop.xlane.xlu0 %122
    %v124 = vadd.f32 %v117, %v123
    %vm125 = vcmask 7168
    %126 = vst.msk [vmem:[#allocation2] sm:$0xff] %vm125, %v124
    %v127 = vpack.c.bf16 %v61, %v61
    %v129 = vsel %vm70, %v127, 0
    %131 = vmatprep.subr.bf16.mxu0 0
    %132 = vmatpush1.bf16.xpose.msra.mxu0 0
    %133 = vmatprep.subr.bf16.mxu0 0
    %134 = vmatpush1.bf16.xpose.msra.mxu0 0
    %135 = vmatprep.subr.bf16.mxu0 0
    %136 = vmatpush1.bf16.xpose.msra.mxu0 0
    %137 = vmatprep.subr.bf16.mxu0 0
    %138 = vmatpush1.bf16.xpose.msra.mxu0 0
    %139 = vmatprep.subr.bf16.mxu0 0
    %140 = vmatpush1.bf16.xpose.msra.mxu0 0
    %141 = vmatprep.subr.bf16.mxu0 0
    %142 = vmatpush1.bf16.xpose.msra.mxu0 0
    %143 = vmatprep.subr.bf16.mxu0 0
    %144 = vmatpush1.bf16.xpose.msra.mxu0 0
    %145 = vmatprep.subr.bf16.mxu0 0
    %146 = vmatpush1.bf16.xpose.msra.mxu0 %v75
    %147 = vmatprep.subr.bf16.mxu0 0
    %148 = vmatpush2.bf16.xpose.msra.mxu0 0
    %149 = vmatprep.subr.bf16.mxu0 0
    %150 = vmatpush2.bf16.xpose.msra.mxu0 0
    %151 = vmatprep.subr.bf16.mxu0 0
    %152 = vmatpush2.bf16.xpose.msra.mxu0 0
    %153 = vmatprep.subr.bf16.mxu0 0
    %154 = vmatpush2.bf16.xpose.msra.mxu0 0
    %155 = vmatprep.subr.bf16.mxu0 0
    %156 = vmatpush2.bf16.xpose.msra.mxu0 0
    %157 = vmatprep.subr.bf16.mxu0 0
    %158 = vmatpush2.bf16.xpose.msra.mxu0 0
    %159 = vmatprep.subr.bf16.mxu0 0
    %160 = vmatpush2.bf16.xpose.msra.mxu0 0
    %161 = vmatprep.subr.bf16.mxu0 0
    %162 = vmatpush2.bf16.xpose.msra.mxu0 0
    %163 = vmatprep.mubr.bf16.mxu0 0
    %164 = vmatmul.mubr.bf16.gmra.mxu0 %v129
    %v165 = vpop.f32.mrf.mxu0
    %v166 = vadd.f32 0.0, %v165
    %v167 = vpop.f32.mrf.mxu0
    %v168 = vpop.f32.mrf.mxu0
    %v169 = vpop.f32.mrf.mxu0
    %170 = vdwg.mxu0
    %v171 = vld [vmem:[#allocation3] sm:$0xff]
    %v172 = vmul.f32 %v166, 1.442695
    %v173 = vpow.pop %v172
    %v174 = vsel %vm120, %v173, 0.0
    %175 = vadd.xlane.f32.xlu0 %v174
    %v176 = vpop.xlane.xlu0 %175
    %v177 = vadd.f32 %v171, %v176
    %178 = vst.msk [vmem:[#allocation3] sm:$0xff] %vm125, %v177
    // Predicated region
    $region30: #{tpu_custom_call.1} parent=1 // pred_check
      %p179 = pneg %p53
    $region31: #{tpu_custom_call.1} parent=1 // pred_check_branch
      %181 = sbr.rel (%p179) target = $region33
    $region32: #{tpu_custom_call.1} parent=1 // pred_region
      %v182 = vmul.f32 %v60, %v61
      %v183 = vsel %vm70, %v182, 0.0
      %184 = vadd.xlane.f32.xlu0 %v183
      %v185 = vpop.xlane.xlu0 %184
      %v186 = vmul.f32 %v60, %v60
      %v187 = vsel %vm70, %v186, 0.0
      %188 = vadd.xlane.f32.xlu0 %v187
      %v189 = vpop.xlane.xlu0 %188
      %v190 = vmul.f32 %v61, %v61
      %v191 = vsel %vm70, %v190, 0.0
      %192 = vadd.xlane.f32.xlu0 %v191
      %v193 = vpop.xlane.xlu0 %192
      %v194 = vld [vmem:[#allocation2] sm:$0xff]
      %v195 = vmul.f32 %v189, 1.442695
      %v196 = vpow.pop %v195
      %v197 = vsub.f32 %v194, %v196
      %v198 = vld [vmem:[#allocation3] sm:$0xff]
      %v199 = vmul.f32 %v193, 1.442695
      %v200 = vpow.pop %v199
      %v201 = vsub.f32 %v198, %v200
      %v202 = vmul.f32 %v185, -2.0
      %v203 = vlog2.pop %v197
      %v204 = vmul.f32 %v203, 0.6931472
      %v205 = vadd.f32 %v202, %v204
      %v206 = vlog2.pop %v201
      %v207 = vmul.f32 %v206, 0.6931472
      %v208 = vadd.f32 %v205, %v207
      %210 = vset.pattern.permute.xlu0 0
      %211 = vperm.xlu0 %210, %v208
      %v212 = vpop.permute.xlu0 %211
      %214 = vst [vmem:[#allocation10] sm:$0xff] %v212
    $region33: #{tpu_custom_call.1} parent=1 // pred_fallthru
      _
    // Predicated region
    $region34: #{tpu_custom_call.1} parent=1 // pred_check
      _
    $region35: #{tpu_custom_call.1} parent=1 // pred_check_branch
      %216 = sbr.rel (0) target = $region37
    $region36: #{tpu_custom_call.1} parent=1 // pred_region
      %s218 = ssub.s32 128, 128
      %219 = vsyncadd [#allocation6], %s218
      %s221 = sshll.u32 [#allocation10], 4
      %s222 = int_to_ptr.vmem [resolvable:$true] %s221
      %224 = dma.vmem_to_hbm [thread:$0]  %s222, 128, %s3, [#allocation6]
    $region37: #{tpu_custom_call.1} parent=1 // pred_fallthru
      _
    // Predicated region
    $region38: #{tpu_custom_call.1} parent=1 // pred_check
      _
    $region39: #{tpu_custom_call.1} parent=1 // pred_check_branch
      %226 = sbr.rel (0) target = $region41
    $region40: #{tpu_custom_call.1} parent=1 // pred_region
      %227 = dma.done [#allocation6], 128
    $region41: #{tpu_custom_call.1} parent=1 // pred_fallthru
      _
    %228 = vsyncpa [#allocation5], 1
    %229 = vsyncpa [#allocation8], 1
    %230 = vsyncpa [#allocation6], 1

</llo_original>
